<compile_context>
chip_gen: v7x
topology: tpu7x:2x2x1
jax: 0.10.0
libtpu: 0.0.40
codegen_flags: <defaults>
</compile_context>

<pallas_src>
import functools
import math

import jax
import jax.numpy as jnp
from jax.experimental import pallas as pl
from jax.experimental.pallas import tpu as pltpu

_LANES = 128
_SUBLANES = 8
# Pad value: for any reasonably-scaled SPD covariance (lambda_max << 1e8) the
# mixture density of a sentinel point underflows to exactly 0 in f32, so no
# validity mask is needed in the hot loop.
_SENTINEL = 1.0e5


def _round_up(v, m):
    return -(-v // m) * m


def _gmm_kernel(c0_ref, c1_ref, c2_ref, x_ref, out_ref, *,
                n_components, dims, n_pairs, tile_rows, chunk_rows):
    """Accumulates sum_n sum_k pi_k * pdf_k(x_n) into a resident (8,128) block."""
    i = pl.program_id(1)
    n_chunks = tile_rows // chunk_rows

    def chunk_contrib(start, acc):
        xc = x_ref[:, pl.ds(start, chunk_rows), :]          # (dims, chunk, 128)
        xs = [xc[a] for a in range(dims)]
        # Pairwise products are shared by all components.
        pairs = []
        for a in range(dims):
            for b in range(a, dims):
                pairs.append(xs[a] * xs[b])
        total = None
        for k in range(n_components):                        # tiny K, d -> unrolled
            # q = logw_k - 0.5 (x - mu_k)^T Sigma_k^-1 (x - mu_k), expanded in x.
            q = c0_ref[k]
            for a in range(dims):
                q = q + c1_ref[k, a] * xs[a]
            for t in range(n_pairs):
                q = q + c2_ref[k, t] * pairs[t]
            pk = jnp.exp(q)                                   # EUP slot (cheap)
            total = pk if total is None else total + pk
        # Fold (chunk, 128) down to one lane-dense (8, 128) vreg.
        folded = total.reshape(chunk_rows // _SUBLANES, _SUBLANES, _LANES).sum(axis=0)
        return acc + folded

    init = jnp.zeros((_SUBLANES, _LANES), jnp.float32)
    if n_chunks == 1:
        contrib = chunk_contrib(0, init)
    else:
        # Rolled loop keeps the live intermediate set at one chunk no matter
        # how large the DMA block (tile_rows) is.
        contrib = jax.lax.fori_loop(
            0, n_chunks,
            lambda c, acc: chunk_contrib(
                pl.multiple_of(c * chunk_rows, chunk_rows), acc),
            init)

    @pl.when(i == 0)
    def _():
        out_ref[...] = jnp.zeros_like(out_ref)

    out_ref[...] += contrib


def _gmm_coefficients(mus, variances, pis, dimensions):
    """Fold the GMM parameters into per-component polynomial coefficients."""
    mus_a = jnp.stack([jnp.asarray(m, jnp.float32) for m in mus])            # (K, d)
    cov = jnp.stack([jnp.asarray(v, jnp.float32) for v in variances])        # (K, d, d)
    pis_a = jnp.stack([jnp.asarray(p, jnp.float32) for p in pis]).reshape(-1)  # (K,)

    icov = jnp.linalg.inv(cov)                                               # (K, d, d)
    _, logdet = jnp.linalg.slogdet(cov)                                      # (K,)
    lognorm = -0.5 * (dimensions * jnp.log(2.0 * jnp.pi) + logdet)
    logw = jnp.log(pis_a) + lognorm                                          # (K,)

    a_mu = jnp.einsum("kab,kb->ka", icov, mus_a)                             # (K, d)
    c0 = logw - 0.5 * jnp.einsum("ka,ka->k", mus_a, a_mu)                    # (K,)
    c1 = a_mu                                                                # (K, d)
    terms = []
    for a in range(dimensions):
        for b in range(a, dimensions):
            factor = -0.5 if a == b else -1.0
            terms.append(factor * icov[:, a, b])
    c2 = jnp.stack(terms, axis=1)                                            # (K, d(d+1)/2)
    return c0, c1, c2


def _gmm_loss_xla(x, mus, variances, pis, coefficient, dimensions):
    """Pure-JAX (XLA-fused) formulation; used both as fast path and reference."""
    loss = 0.0
    for k in range(len(mus)):
        mu = jnp.asarray(mus[k], jnp.float32)
        cov = jnp.asarray(variances[k], jnp.float32)
        icov = jnp.linalg.inv(cov)
        _, logdet = jnp.linalg.slogdet(cov)
        diff = x - mu[None, :]
        q = jnp.einsum("ni,ij,nj->n", diff, icov, diff)
        logp = -0.5 * (dimensions * jnp.log(2.0 * jnp.pi) + logdet + q)
        loss = loss + jnp.asarray(pis[k], jnp.float32) * jnp.mean(jnp.exp(logp))
    return coefficient * (-jnp.log(loss))


def gmm_loss_pallas(adv_patch, mus, variances, pis, *, coefficient=1.0,
                    dimensions=3, tile_rows=2048, max_single_tile_rows=2048,
                    chunk_rows=256, min_points_for_pallas=4096):
    # --- glue (plain JAX): reshape, tiny KxdXd linear algebra, repack/pad ---
    x = adv_patch.reshape(-1, dimensions).astype(jnp.float32)  # like .view(-1, 3)
    n = x.shape[0]

    if n < min_points_for_pallas:
        # Launch + fixed per-step overhead dominates; fused XLA wins here.
        return _gmm_loss_xla(x, mus, variances, pis, coefficient, dimensions)

    c0, c1, c2 = _gmm_coefficients(mus, variances, pis, dimensions)
    k_comp = int(c0.shape[0])
    n_pairs = dimensions * (dimensions + 1) // 2

    rows = -(-n // _LANES)                                      # ceil(N / 128)
    if rows <= max_single_tile_rows:
        n_split, n_inner = 1, 1
        tr = _round_up(rows, _SUBLANES)
        if tr > chunk_rows:
            tr = _round_up(tr, chunk_rows)
    else:
        n_split = 2                                             # both TCs on v7x
        per_split = -(-rows // n_split)
        # Keep >= 2 inner steps per split for pipelining, capped at tile_rows;
        # tile stays a multiple of the in-kernel chunk.
        target = max(chunk_rows, _round_up(-(-per_split // 2), chunk_rows))
        tr = min(_round_up(tile_rows, chunk_rows), target)
        n_inner = -(-per_split // tr)
    chunk = min(chunk_rows, tr)
    rows_pad = n_split * n_inner * tr
    n_pad_points = rows_pad * _LANES

    # Sublane/lane-dense layout (d, R, 128); point p -> (row p//128, lane p%128).
    # Pads carry a large sentinel so their density is exactly 0 (mask-free).
    # TODO(synk): the pad+transpose is an extra HBM pass over x; for very large
    # N (v5e, HBM-bound) it could be folded into the kernel with a strided DMA
    # gather or by having the producer emit (3, N) directly.
    xt = jnp.pad(x, ((0, n_pad_points - n), (0, 0)),
                 constant_values=_SENTINEL).T.reshape(dimensions, rows_pad, _LANES)

    kernel = functools.partial(_gmm_kernel, n_components=k_comp, dims=dimensions,
                               n_pairs=n_pairs, tile_rows=tr, chunk_rows=chunk)

    # --- hot path: per-point polynomial, exp, lane-dense accumulation ---
    partials = pl.pallas_call(
        kernel,
        out_shape=jax.ShapeDtypeStruct((n_split * _SUBLANES, _LANES), jnp.float32),
        grid=(n_split, n_inner),
        in_specs=[
            pl.BlockSpec(memory_space=pltpu.MemorySpace.SMEM),   # c0  (K,)
            pl.BlockSpec(memory_space=pltpu.MemorySpace.SMEM),   # c1  (K, d)
            pl.BlockSpec(memory_space=pltpu.MemorySpace.SMEM),   # c2  (K, d(d+1)/2)
            pl.BlockSpec((dimensions, tr, _LANES),               # x   (d, R, 128)
                         lambda s, i: (0, s * n_inner + i, 0)),
        ],
        out_specs=pl.BlockSpec((_SUBLANES, _LANES), lambda s, i: (s, 0)),
        compiler_params=pltpu.CompilerParams(
            dimension_semantics=("parallel", "arbitrary")),
    )(c0, c1, c2, xt)

    weighted_sum = jnp.sum(partials)       # sum over splits/lanes -> sum_n sum_k pi_k pdf_k
    loss = -jnp.log(weighted_sum / n)      # mean over points -> mixture -> -log
    return coefficient * loss


def gmm_loss_reference(adv_patch, mus, variances, pis, *, coefficient=1.0,
                       dimensions=3):
    """Pure-JAX reference mirroring the PyTorch forward (uses the (x-mu) form)."""
    x = adv_patch.reshape(-1, dimensions).astype(jnp.float32)
    return _gmm_loss_xla(x, mus, variances, pis, coefficient, dimensions)


if __name__ == "__main__":
    key = jax.random.PRNGKey(0)
    k_patch, k_mu, k_cov, k_pi, k_pred, k_big = jax.random.split(key, 6)

    # adv_patch: NCHW image-like tensor; .view(-1, 3) -> 2*3*16*16/3 = 512 points.
    adv_patch = jax.random.uniform(k_patch, (2, 3, 16, 16), dtype=jnp.float32)
    predictions = jax.random.normal(k_pred, (2, 4), dtype=jnp.float32)  # unused by forward

    # Deterministic GMM parameters (K=3 components, dim=3).
    n_components, dims = 3, 3
    mus = [jax.random.uniform(jax.random.fold_in(k_mu, i), (dims,),
                              minval=0.2, maxval=0.8) for i in range(n_components)]
    variances = []
    for i in range(n_components):
        a = jax.random.normal(jax.random.fold_in(k_cov, i), (dims, dims)) * 0.1
        variances.append(a @ a.T + 0.2 * jnp.eye(dims))          # SPD
    raw = jax.random.uniform(k_pi, (n_components,))
    raw = raw / jnp.sum(raw)
    pis = [raw[i] for i in range(n_components)]

    coefficient = 1.5

    # 1) Small N: takes the pure-JAX fast path.
    ref_small = gmm_loss_reference(adv_patch, mus, variances, pis, coefficient=coefficient)
    out_small = gmm_loss_pallas(adv_patch, mus, variances, pis, coefficient=coefficient)
    out_small = jax.block_until_ready(out_small)
    assert jnp.allclose(out_small, ref_small, rtol=1e-4, atol=1e-4), (out_small, ref_small)

    # 2) Same small N, forced through the Pallas kernel:
    #    single block, sentinel-padded tail.
    out_forced = gmm_loss_pallas(adv_patch, mus, variances, pis,
                                 coefficient=coefficient, min_points_for_pallas=0)
    out_forced = jax.block_until_ready(out_forced)
    assert jnp.allclose(out_forced, ref_small, rtol=1e-4, atol=1e-4), (out_forced, ref_small)

    # 3) Larger N, default tiling: single large block + in-kernel chunk loop.
    big_patch = jax.random.uniform(k_big, (4, 3, 96, 96), dtype=jnp.float32)
    ref_big = gmm_loss_reference(big_patch, mus, variances, pis, coefficient=coefficient)
    out_big = gmm_loss_pallas(big_patch, mus, variances, pis, coefficient=coefficient)
    out_big = jax.block_until_ready(out_big)
    assert jnp.allclose(out_big, ref_big, rtol=1e-4, atol=1e-4), (out_big, ref_big)

    # 4) Same data, forced small tiles: exercises the 2-split, multi-step grid
    #    (the path very large inputs take with the default tile_rows=2048).
    out_tiled = gmm_loss_pallas(big_patch, mus, variances, pis, coefficient=coefficient,
                                tile_rows=128, max_single_tile_rows=64)
    out_tiled = jax.block_until_ready(out_tiled)
    assert jnp.allclose(out_tiled, ref_big, rtol=1e-4, atol=1e-4), (out_tiled, ref_big)

    print("KERNEL_OK")
</pallas_src>

<mosaic_0001>
module attributes {stable_mosaic.version = 11 : i64} {
  func.func @_gmm_kernel(%arg0: i32, %arg1: i32, %arg2: memref<3xf32, #tpu.memory_space<smem>>, %arg3: memref<3x3xf32, #tpu.memory_space<smem>>, %arg4: memref<3x6xf32, #tpu.memory_space<smem>>, %arg5: memref<3x8x128xf32, #tpu.memory_space<vmem>>, %arg6: memref<8x128xf32, #tpu.memory_space<vmem>>) attributes {dimension_semantics = [#tpu.dimension_semantics<parallel>, #tpu.dimension_semantics<arbitrary>], iteration_bounds = array<i64: 1, 1>, scalar_prefetch = 0 : i64, scratch_operands = 0 : i64, tpu.core_type = #tpu.core_type<tc>, window_params = [{transform_indices = @transform_0, window_bounds = array<i64: 3>}, {transform_indices = @transform_1, window_bounds = array<i64: 3, 3>}, {transform_indices = @transform_2, window_bounds = array<i64: 3, 6>}, {transform_indices = @transform_3, window_bounds = array<i64: 3, 8, 128>}, {transform_indices = @transform_4, window_bounds = array<i64: 8, 128>}]} {
    %cst = arith.constant 0.000000e+00 : f32
    %0 = vector.broadcast %cst : f32 to vector<8x128xf32>
    %c0 = arith.constant 0 : index
    %c0_0 = arith.constant 0 : index
    %c0_1 = arith.constant 0 : index
    %1 = vector.load %arg5[%c0, %c0_0, %c0_1] : memref<3x8x128xf32, #tpu.memory_space<vmem>>, vector<3x8x128xf32>
    %2 = vector.extract_strided_slice %1 {offsets = [0, 0, 0], sizes = [1, 8, 128], strides = [1, 1, 1]} : vector<3x8x128xf32> to vector<1x8x128xf32>
    %3 = vector.shape_cast %2 : vector<1x8x128xf32> to vector<8x128xf32>
    %4 = vector.extract_strided_slice %1 {offsets = [1, 0, 0], sizes = [1, 8, 128], strides = [1, 1, 1]} : vector<3x8x128xf32> to vector<1x8x128xf32>
    %5 = vector.shape_cast %4 : vector<1x8x128xf32> to vector<8x128xf32>
    %6 = vector.extract_strided_slice %1 {offsets = [2, 0, 0], sizes = [1, 8, 128], strides = [1, 1, 1]} : vector<3x8x128xf32> to vector<1x8x128xf32>
    %7 = vector.shape_cast %6 : vector<1x8x128xf32> to vector<8x128xf32>
    %8 = arith.mulf %3, %3 : vector<8x128xf32>
    %9 = arith.mulf %3, %5 : vector<8x128xf32>
    %10 = arith.mulf %3, %7 : vector<8x128xf32>
    %11 = arith.mulf %5, %5 : vector<8x128xf32>
    %12 = arith.mulf %5, %7 : vector<8x128xf32>
    %13 = arith.mulf %7, %7 : vector<8x128xf32>
    %c0_2 = arith.constant 0 : index
    %14 = memref.load %arg2[%c0_2] : memref<3xf32, #tpu.memory_space<smem>>
    %c0_3 = arith.constant 0 : index
    %c0_4 = arith.constant 0 : index
    %15 = memref.load %arg3[%c0_3, %c0_4] : memref<3x3xf32, #tpu.memory_space<smem>>
    %16 = vector.broadcast %15 : f32 to vector<8x128xf32>
    %17 = arith.mulf %16, %3 : vector<8x128xf32>
    %18 = vector.broadcast %14 : f32 to vector<8x128xf32>
    %19 = arith.addf %18, %17 : vector<8x128xf32>
    %c0_5 = arith.constant 0 : index
    %c1 = arith.constant 1 : index
    %20 = memref.load %arg3[%c0_5, %c1] : memref<3x3xf32, #tpu.memory_space<smem>>
    %21 = vector.broadcast %20 : f32 to vector<8x128xf32>
    %22 = arith.mulf %21, %5 : vector<8x128xf32>
    %23 = arith.addf %19, %22 : vector<8x128xf32>
    %c0_6 = arith.constant 0 : index
    %c2 = arith.constant 2 : index
    %24 = memref.load %arg3[%c0_6, %c2] : memref<3x3xf32, #tpu.memory_space<smem>>
    %25 = vector.broadcast %24 : f32 to vector<8x128xf32>
    %26 = arith.mulf %25, %7 : vector<8x128xf32>
    %27 = arith.addf %23, %26 : vector<8x128xf32>
    %c0_7 = arith.constant 0 : index
    %c0_8 = arith.constant 0 : index
    %28 = memref.load %arg4[%c0_7, %c0_8] : memref<3x6xf32, #tpu.memory_space<smem>>
    %29 = vector.broadcast %28 : f32 to vector<8x128xf32>
    %30 = arith.mulf %29, %8 : vector<8x128xf32>
    %31 = arith.addf %27, %30 : vector<8x128xf32>
    %c0_9 = arith.constant 0 : index
    %c1_10 = arith.constant 1 : index
    %32 = memref.load %arg4[%c0_9, %c1_10] : memref<3x6xf32, #tpu.memory_space<smem>>
    %33 = vector.broadcast %32 : f32 to vector<8x128xf32>
    %34 = arith.mulf %33, %9 : vector<8x128xf32>
    %35 = arith.addf %31, %34 : vector<8x128xf32>
    %c0_11 = arith.constant 0 : index
    %c2_12 = arith.constant 2 : index
    %36 = memref.load %arg4[%c0_11, %c2_12] : memref<3x6xf32, #tpu.memory_space<smem>>
    %37 = vector.broadcast %36 : f32 to vector<8x128xf32>
    %38 = arith.mulf %37, %10 : vector<8x128xf32>
    %39 = arith.addf %35, %38 : vector<8x128xf32>
    %c0_13 = arith.constant 0 : index
    %c3 = arith.constant 3 : index
    %40 = memref.load %arg4[%c0_13, %c3] : memref<3x6xf32, #tpu.memory_space<smem>>
    %41 = vector.broadcast %40 : f32 to vector<8x128xf32>
    %42 = arith.mulf %41, %11 : vector<8x128xf32>
    %43 = arith.addf %39, %42 : vector<8x128xf32>
    %c0_14 = arith.constant 0 : index
    %c4 = arith.constant 4 : index
    %44 = memref.load %arg4[%c0_14, %c4] : memref<3x6xf32, #tpu.memory_space<smem>>
    %45 = vector.broadcast %44 : f32 to vector<8x128xf32>
    %46 = arith.mulf %45, %12 : vector<8x128xf32>
    %47 = arith.addf %43, %46 : vector<8x128xf32>
    %c0_15 = arith.constant 0 : index
    %c5 = arith.constant 5 : index
    %48 = memref.load %arg4[%c0_15, %c5] : memref<3x6xf32, #tpu.memory_space<smem>>
    %49 = vector.broadcast %48 : f32 to vector<8x128xf32>
    %50 = arith.mulf %49, %13 : vector<8x128xf32>
    %51 = arith.addf %47, %50 : vector<8x128xf32>
    %52 = math.exp %51 : vector<8x128xf32>
    %c1_16 = arith.constant 1 : index
    %53 = memref.load %arg2[%c1_16] : memref<3xf32, #tpu.memory_space<smem>>
    %c1_17 = arith.constant 1 : index
    %c0_18 = arith.constant 0 : index
    %54 = memref.load %arg3[%c1_17, %c0_18] : memref<3x3xf32, #tpu.memory_space<smem>>
    %55 = vector.broadcast %54 : f32 to vector<8x128xf32>
    %56 = arith.mulf %55, %3 : vector<8x128xf32>
    %57 = vector.broadcast %53 : f32 to vector<8x128xf32>
    %58 = arith.addf %57, %56 : vector<8x128xf32>
    %c1_19 = arith.constant 1 : index
    %c1_20 = arith.constant 1 : index
    %59 = memref.load %arg3[%c1_19, %c1_20] : memref<3x3xf32, #tpu.memory_space<smem>>
    %60 = vector.broadcast %59 : f32 to vector<8x128xf32>
    %61 = arith.mulf %60, %5 : vector<8x128xf32>
    %62 = arith.addf %58, %61 : vector<8x128xf32>
    %c1_21 = arith.constant 1 : index
    %c2_22 = arith.constant 2 : index
    %63 = memref.load %arg3[%c1_21, %c2_22] : memref<3x3xf32, #tpu.memory_space<smem>>
    %64 = vector.broadcast %63 : f32 to vector<8x128xf32>
    %65 = arith.mulf %64, %7 : vector<8x128xf32>
    %66 = arith.addf %62, %65 : vector<8x128xf32>
    %c1_23 = arith.constant 1 : index
    %c0_24 = arith.constant 0 : index
    %67 = memref.load %arg4[%c1_23, %c0_24] : memref<3x6xf32, #tpu.memory_space<smem>>
    %68 = vector.broadcast %67 : f32 to vector<8x128xf32>
    %69 = arith.mulf %68, %8 : vector<8x128xf32>
    %70 = arith.addf %66, %69 : vector<8x128xf32>
    %c1_25 = arith.constant 1 : index
    %c1_26 = arith.constant 1 : index
    %71 = memref.load %arg4[%c1_25, %c1_26] : memref<3x6xf32, #tpu.memory_space<smem>>
    %72 = vector.broadcast %71 : f32 to vector<8x128xf32>
    %73 = arith.mulf %72, %9 : vector<8x128xf32>
    %74 = arith.addf %70, %73 : vector<8x128xf32>
    %c1_27 = arith.constant 1 : index
    %c2_28 = arith.constant 2 : index
    %75 = memref.load %arg4[%c1_27, %c2_28] : memref<3x6xf32, #tpu.memory_space<smem>>
    %76 = vector.broadcast %75 : f32 to vector<8x128xf32>
    %77 = arith.mulf %76, %10 : vector<8x128xf32>
    %78 = arith.addf %74, %77 : vector<8x128xf32>
    %c1_29 = arith.constant 1 : index
    %c3_30 = arith.constant 3 : index
    %79 = memref.load %arg4[%c1_29, %c3_30] : memref<3x6xf32, #tpu.memory_space<smem>>
    %80 = vector.broadcast %79 : f32 to vector<8x128xf32>
    %81 = arith.mulf %80, %11 : vector<8x128xf32>
    %82 = arith.addf %78, %81 : vector<8x128xf32>
    %c1_31 = arith.constant 1 : index
    %c4_32 = arith.constant 4 : index
    %83 = memref.load %arg4[%c1_31, %c4_32] : memref<3x6xf32, #tpu.memory_space<smem>>
    %84 = vector.broadcast %83 : f32 to vector<8x128xf32>
    %85 = arith.mulf %84, %12 : vector<8x128xf32>
    %86 = arith.addf %82, %85 : vector<8x128xf32>
    %c1_33 = arith.constant 1 : index
    %c5_34 = arith.constant 5 : index
    %87 = memref.load %arg4[%c1_33, %c5_34] : memref<3x6xf32, #tpu.memory_space<smem>>
    %88 = vector.broadcast %87 : f32 to vector<8x128xf32>
    %89 = arith.mulf %88, %13 : vector<8x128xf32>
    %90 = arith.addf %86, %89 : vector<8x128xf32>
    %91 = math.exp %90 : vector<8x128xf32>
    %92 = arith.addf %52, %91 : vector<8x128xf32>
    %c2_35 = arith.constant 2 : index
    %93 = memref.load %arg2[%c2_35] : memref<3xf32, #tpu.memory_space<smem>>
    %c2_36 = arith.constant 2 : index
    %c0_37 = arith.constant 0 : index
    %94 = memref.load %arg3[%c2_36, %c0_37] : memref<3x3xf32, #tpu.memory_space<smem>>
    %95 = vector.broadcast %94 : f32 to vector<8x128xf32>
    %96 = arith.mulf %95, %3 : vector<8x128xf32>
    %97 = vector.broadcast %93 : f32 to vector<8x128xf32>
    %98 = arith.addf %97, %96 : vector<8x128xf32>
    %c2_38 = arith.constant 2 : index
    %c1_39 = arith.constant 1 : index
    %99 = memref.load %arg3[%c2_38, %c1_39] : memref<3x3xf32, #tpu.memory_space<smem>>
    %100 = vector.broadcast %99 : f32 to vector<8x128xf32>
    %101 = arith.mulf %100, %5 : vector<8x128xf32>
    %102 = arith.addf %98, %101 : vector<8x128xf32>
    %c2_40 = arith.constant 2 : index
    %c2_41 = arith.constant 2 : index
    %103 = memref.load %arg3[%c2_40, %c2_41] : memref<3x3xf32, #tpu.memory_space<smem>>
    %104 = vector.broadcast %103 : f32 to vector<8x128xf32>
    %105 = arith.mulf %104, %7 : vector<8x128xf32>
    %106 = arith.addf %102, %105 : vector<8x128xf32>
    %c2_42 = arith.constant 2 : index
    %c0_43 = arith.constant 0 : index
    %107 = memref.load %arg4[%c2_42, %c0_43] : memref<3x6xf32, #tpu.memory_space<smem>>
    %108 = vector.broadcast %107 : f32 to vector<8x128xf32>
    %109 = arith.mulf %108, %8 : vector<8x128xf32>
    %110 = arith.addf %106, %109 : vector<8x128xf32>
    %c2_44 = arith.constant 2 : index
    %c1_45 = arith.constant 1 : index
    %111 = memref.load %arg4[%c2_44, %c1_45] : memref<3x6xf32, #tpu.memory_space<smem>>
    %112 = vector.broadcast %111 : f32 to vector<8x128xf32>
    %113 = arith.mulf %112, %9 : vector<8x128xf32>
    %114 = arith.addf %110, %113 : vector<8x128xf32>
    %c2_46 = arith.constant 2 : index
    %c2_47 = arith.constant 2 : index
    %115 = memref.load %arg4[%c2_46, %c2_47] : memref<3x6xf32, #tpu.memory_space<smem>>
    %116 = vector.broadcast %115 : f32 to vector<8x128xf32>
    %117 = arith.mulf %116, %10 : vector<8x128xf32>
    %118 = arith.addf %114, %117 : vector<8x128xf32>
    %c2_48 = arith.constant 2 : index
    %c3_49 = arith.constant 3 : index
    %119 = memref.load %arg4[%c2_48, %c3_49] : memref<3x6xf32, #tpu.memory_space<smem>>
    %120 = vector.broadcast %119 : f32 to vector<8x128xf32>
    %121 = arith.mulf %120, %11 : vector<8x128xf32>
    %122 = arith.addf %118, %121 : vector<8x128xf32>
    %c2_50 = arith.constant 2 : index
    %c4_51 = arith.constant 4 : index
    %123 = memref.load %arg4[%c2_50, %c4_51] : memref<3x6xf32, #tpu.memory_space<smem>>
    %124 = vector.broadcast %123 : f32 to vector<8x128xf32>
    %125 = arith.mulf %124, %12 : vector<8x128xf32>
    %126 = arith.addf %122, %125 : vector<8x128xf32>
    %c2_52 = arith.constant 2 : index
    %c5_53 = arith.constant 5 : index
    %127 = memref.load %arg4[%c2_52, %c5_53] : memref<3x6xf32, #tpu.memory_space<smem>>
    %128 = vector.broadcast %127 : f32 to vector<8x128xf32>
    %129 = arith.mulf %128, %13 : vector<8x128xf32>
    %130 = arith.addf %126, %129 : vector<8x128xf32>
    %131 = math.exp %130 : vector<8x128xf32>
    %132 = arith.addf %92, %131 : vector<8x128xf32>
    %133 = vector.shape_cast %132 : vector<8x128xf32> to vector<1x8x128xf32>
    %cst_54 = arith.constant dense<0.000000e+00> : vector<8x128xf32>
    %134 = vector.multi_reduction <add>, %133, %cst_54 [0] : vector<1x8x128xf32> to vector<8x128xf32>
    %135 = arith.addf %0, %134 : vector<8x128xf32>
    %c0_i32 = arith.constant 0 : i32
    %136 = arith.cmpi eq, %arg1, %c0_i32 : i32
    %137 = arith.extui %136 : i1 to i32
    %c0_i32_55 = arith.constant 0 : i32
    %138 = arith.cmpi ne, %137, %c0_i32_55 : i32
    scf.if %138 {
      %cst_60 = arith.constant 0.000000e+00 : f32
      %142 = vector.broadcast %cst_60 : f32 to vector<8x128xf32>
      %c0_61 = arith.constant 0 : index
      %c0_62 = arith.constant 0 : index
      %143 = vector.load %arg6[%c0_61, %c0_62] : memref<8x128xf32, #tpu.memory_space<vmem>>, vector<8x128xf32>
      tpu.vector_store %arg6[%c0_61, %c0_62], %142 {strides = array<i32>} : memref<8x128xf32, #tpu.memory_space<vmem>>, vector<8x128xf32>,
    } else {
    }
    %c0_56 = arith.constant 0 : index
    %c0_57 = arith.constant 0 : index
    %139 = vector.load %arg6[%c0_56, %c0_57] : memref<8x128xf32, #tpu.memory_space<vmem>>, vector<8x128xf32>
    %140 = arith.addf %139, %135 : vector<8x128xf32>
    %c0_58 = arith.constant 0 : index
    %c0_59 = arith.constant 0 : index
    %141 = vector.load %arg6[%c0_58, %c0_59] : memref<8x128xf32, #tpu.memory_space<vmem>>, vector<8x128xf32>
    tpu.vector_store %arg6[%c0_58, %c0_59], %140 {strides = array<i32>} : memref<8x128xf32, #tpu.memory_space<vmem>>, vector<8x128xf32>,
    return
  }
  func.func @transform_0(%arg0: i32, %arg1: i32) -> i32 {
    %c0_i32 = arith.constant 0 : i32
    %c0_i32_0 = arith.constant 0 : i32
    return %c0_i32 : i32
  }
  func.func @transform_1(%arg0: i32, %arg1: i32) -> (i32, i32) {
    %c0_i32 = arith.constant 0 : i32
    %c0_i32_0 = arith.constant 0 : i32
    %c0_i32_1 = arith.constant 0 : i32
    return %c0_i32, %c0_i32_0 : i32, i32
  }
  func.func @transform_2(%arg0: i32, %arg1: i32) -> (i32, i32) {
    %c0_i32 = arith.constant 0 : i32
    %c0_i32_0 = arith.constant 0 : i32
    %c0_i32_1 = arith.constant 0 : i32
    return %c0_i32, %c0_i32_0 : i32, i32
  }
  func.func @transform_3(%arg0: i32, %arg1: i32) -> (i32, i32, i32) {
    %c1_i32 = arith.constant 1 : i32
    %0 = arith.muli %arg0, %c1_i32 : i32
    %1 = arith.addi %0, %arg1 : i32
    %c0_i32 = arith.constant 0 : i32
    %c0_i32_0 = arith.constant 0 : i32
    %c0_i32_1 = arith.constant 0 : i32
    return %c0_i32, %1, %c0_i32_0 : i32, i32, i32
  }
  func.func @transform_4(%arg0: i32, %arg1: i32) -> (i32, i32) {
    %c0_i32 = arith.constant 0 : i32
    %c0_i32_0 = arith.constant 0 : i32
    return %arg0, %c0_i32 : i32, i32
  }
}

</mosaic_0001>

<llo_original>
// kernel: tpu_custom_call.1
$region0: #{tpu_custom_call.1}
  #allocation0 [shape = 'u32[]', space=smem, size = 0x4, offset = 0x4, fixed_abs, tag = 'smem constant byte address 0x4 - core index']
  #allocation1 [shape = 'u32[144,128]{1,0:T(1,128)}', space=vmem, size = 0x12000, scoped, tag = 'internal scratch']
  %s0 = inlined_call_operand.hbm [shape: f32[3], index: 0, kind: input, shape index: {}]
  %s1 = inlined_call_operand.hbm [shape: f32[3,3], index: 1, kind: input, shape index: {}]
  %s2 = inlined_call_operand.vmem [shape: f32[3,6], index: 2, kind: input, shape index: {}]
  %s3 = inlined_call_operand.hbm [shape: f32[3,8,128], index: 3, kind: input, shape index: {}]
  %s4 = inlined_call_operand.hbm [shape: f32[8,128], index: 4, kind: output, shape index: {}]
  %s5 = sld [smem:[#allocation0]]
  $region46: #{tpu_custom_call.1} parent=0
    _
  %s7 = ssub.s32 1, %s5
  %s8 = scalar_select 0, %s7, %s5
  $region1: #{tpu_custom_call.1} parent=0
    #allocation2 [shape = 'u8[512]{0}', space=smem, size = 0x200, scoped, tag = 'input window, operand 0, single buffered']
    #allocation3 [shape = 's32[1]{0}', space=sflag, size = 0x4, scoped, tag = 'scoped memory for tpu_custom_call.1']
    #allocation4 [shape = 's32[1]{0}', space=sflag, size = 0x4, scoped, tag = 'scoped memory for tpu_custom_call.1']
    #allocation5 [shape = 's32[1]{0}', space=sflag, size = 0x4, scoped, tag = 'scoped memory for tpu_custom_call.1']
    #allocation6 [shape = 's32[1]{0}', space=sflag, size = 0x4, scoped, tag = 'scoped memory for tpu_custom_call.1']
    #allocation7 [shape = 'u8[2048]{0}', space=smem, size = 0x800, scoped, tag = 'input window, operand 1, single buffered']
    #allocation8 [shape = 's32[1]{0}', space=sflag, size = 0x4, scoped, tag = 'scoped memory for tpu_custom_call.1']
    #allocation9 [shape = 'u8[2048]{0}', space=smem, size = 0x800, scoped, tag = 'input window, operand 2, single buffered']
    #allocation10 [shape = 'u8[12288]{0}', space=vmem, size = 0x3000, scoped, tag = 'input window, operand 3, single buffered']
    #allocation11 [shape = 'u8[4096]{0}', space=vmem, size = 0x1000, scoped, tag = 'output window, operand 0, single buffered']
    %9 = vsyncpa [#allocation5], 0
    %10 = vsyncpa [#allocation8], 0
    %11 = vsyncpa [#allocation6], 0
    %12 = vsyncpa [#allocation3], 0
    %13 = vsyncpa [#allocation4], 0
    // Predicated region
    $region2: #{tpu_custom_call.1} parent=1 // pred_check
      _
    $region3: #{tpu_custom_call.1} parent=1 // pred_check_branch
      %15 = sbr.rel (0) target = $region5
    $region4: #{tpu_custom_call.1} parent=1 // pred_region
      %s17 = ssub.s32 16, 16
      %18 = vsyncadd [#allocation5], %s17
      %21 = dma.hbm_to_smem %s0, 16, [#allocation2], [#allocation5]
    $region5: #{tpu_custom_call.1} parent=1 // pred_fallthru
      _
    // Predicated region
    $region6: #{tpu_custom_call.1} parent=1 // pred_check
      _
    $region7: #{tpu_custom_call.1} parent=1 // pred_check_branch
      %23 = sbr.rel (0) target = $region9
    $region8: #{tpu_custom_call.1} parent=1 // pred_region
      %s25 = ssub.s32 64, 64
      %26 = vsyncadd [#allocation8], %s25
      %29 = dma.hbm_to_smem %s1, 64, [#allocation7], [#allocation8]
    $region9: #{tpu_custom_call.1} parent=1 // pred_fallthru
      _
    // Predicated region
    $region10: #{tpu_custom_call.1} parent=1 // pred_check
      _
    $region11: #{tpu_custom_call.1} parent=1 // pred_check_branch
      %31 = sbr.rel (0) target = $region13
    $region12: #{tpu_custom_call.1} parent=1 // pred_region
      %s33 = ssub.s32 64, 64
      %34 = vsyncadd [#allocation6], %s33
      %s36 = sshll.u32 %s2, 4
      %s37 = int_to_ptr.vmem [resolvable:$true] %s36
      %39 = dma.vmem_to_smem %s37, 64, [#allocation9], [#allocation6]
    $region13: #{tpu_custom_call.1} parent=1 // pred_fallthru
      _
    // Predicated region
    $region14: #{tpu_custom_call.1} parent=1 // pred_check
      _
    $region15: #{tpu_custom_call.1} parent=1 // pred_check_branch
      %41 = sbr.rel (0) target = $region17
    $region16: #{tpu_custom_call.1} parent=1 // pred_region
      %s42 = sadd.s32 0, 0
      %s44 = ssub.s32 384, 384
      %45 = vsyncadd [#allocation3], %s44
      %s46 = smul.addr %s42, 128
      %s47 = scalar_lea.hbm %s3, %s46
      %s48 = sshll.u32 [#allocation10], 4
      %s49 = int_to_ptr.vmem [resolvable:$true] %s48
      %54 = dma.hbm_to_vmem [thread:$0]  %s47, 384, %s49, [#allocation3], 128, 128, 8
    $region17: #{tpu_custom_call.1} parent=1 // pred_fallthru
      _
    // Predicated region
    $region18: #{tpu_custom_call.1} parent=1 // pred_check
      _
    $region19: #{tpu_custom_call.1} parent=1 // pred_check_branch
      %56 = sbr.rel (0) target = $region21
    $region20: #{tpu_custom_call.1} parent=1 // pred_region
      %57 = dma.done [#allocation5], 16
    $region21: #{tpu_custom_call.1} parent=1 // pred_fallthru
      _
    // Predicated region
    $region22: #{tpu_custom_call.1} parent=1 // pred_check
      _
    $region23: #{tpu_custom_call.1} parent=1 // pred_check_branch
      %59 = sbr.rel (0) target = $region25
    $region24: #{tpu_custom_call.1} parent=1 // pred_region
      %60 = dma.done [#allocation8], 64
    $region25: #{tpu_custom_call.1} parent=1 // pred_fallthru
      _
    // Predicated region
    $region26: #{tpu_custom_call.1} parent=1 // pred_check
      _
    $region27: #{tpu_custom_call.1} parent=1 // pred_check_branch
      %62 = sbr.rel (0) target = $region29
    $region28: #{tpu_custom_call.1} parent=1 // pred_region
      %63 = dma.done [#allocation6], 64
    $region29: #{tpu_custom_call.1} parent=1 // pred_fallthru
      _
    // Predicated region
    $region30: #{tpu_custom_call.1} parent=1 // pred_check
      _
    $region31: #{tpu_custom_call.1} parent=1 // pred_check_branch
      %65 = sbr.rel (0) target = $region33
    $region32: #{tpu_custom_call.1} parent=1 // pred_region
      %66 = dma.done [#allocation3], 384
    $region33: #{tpu_custom_call.1} parent=1 // pred_fallthru
      _
    %67 = sfence
    %s68 = sadd.s32 0, 0
    %v69 = vld [vmem:[#allocation10] sm:$0xff]
    %v70 = vld [vmem:[#allocation10 + $0x8] sm:$0xff]
    %v71 = vld [vmem:[#allocation10 + $0x10] sm:$0xff]
    %v72 = vmul.f32 %v69, %v69
    %v73 = vmul.f32 %v69, %v70
    %v74 = vmul.f32 %v69, %v71
    %v75 = vmul.f32 %v70, %v70
    %v76 = vmul.f32 %v70, %v71
    %v77 = vmul.f32 %v71, %v71
    %s78 = sld [smem:[#allocation2]]
    %s79 = sld [smem:[#allocation7]]
    %v80 = vstv %s79
    %v81 = vmul.f32 %v80, %v69
    %v82 = vstv %s78
    %v83 = vadd.f32 %v82, %v81
    %s84 = sld [smem:[#allocation7 + $0x1]]
    %v85 = vstv %s84
    %v86 = vmul.f32 %v85, %v70
    %v87 = vadd.f32 %v83, %v86
    %s88 = sld [smem:[#allocation7 + $0x2]]
    %v89 = vstv %s88
    %v90 = vmul.f32 %v89, %v71
    %v91 = vadd.f32 %v87, %v90
    %s92 = sld [smem:[#allocation9]]
    %v93 = vstv %s92
    %v94 = vmul.f32 %v93, %v72
    %v95 = vadd.f32 %v91, %v94
    %s96 = sld [smem:[#allocation9 + $0x1]]
    %v97 = vstv %s96
    %v98 = vmul.f32 %v97, %v73
    %v99 = vadd.f32 %v95, %v98
    %s100 = sld [smem:[#allocation9 + $0x2]]
    %v101 = vstv %s100
    %v102 = vmul.f32 %v101, %v74
    %v103 = vadd.f32 %v99, %v102
    %s104 = sld [smem:[#allocation9 + $0x3]]
    %v105 = vstv %s104
    %v106 = vmul.f32 %v105, %v75
    %v107 = vadd.f32 %v103, %v106
    %s108 = sld [smem:[#allocation9 + $0x4]]
    %v109 = vstv %s108
    %v110 = vmul.f32 %v109, %v76
    %v111 = vadd.f32 %v107, %v110
    %s112 = sld [smem:[#allocation9 + $0x5]]
    %v113 = vstv %s112
    %v114 = vmul.f32 %v113, %v77
    %v115 = vadd.f32 %v111, %v114
    %v116 = vmul.f32 %v115, 1.442695
    %v117 = vpow.pop %v116
    %s118 = sld [smem:[#allocation2 + $0x1]]
    %s119 = sld [smem:[#allocation7 + $0x80]]
    %v120 = vstv %s119
    %v121 = vmul.f32 %v120, %v69
    %v122 = vstv %s118
    %v123 = vadd.f32 %v122, %v121
    %s124 = sld [smem:[#allocation7 + $0x81]]
    %v125 = vstv %s124
    %v126 = vmul.f32 %v125, %v70
    %v127 = vadd.f32 %v123, %v126
    %s128 = sld [smem:[#allocation7 + $0x82]]
    %v129 = vstv %s128
    %v130 = vmul.f32 %v129, %v71
    %v131 = vadd.f32 %v127, %v130
    %s132 = sld [smem:[#allocation9 + $0x80]]
    %v133 = vstv %s132
    %v134 = vmul.f32 %v133, %v72
    %v135 = vadd.f32 %v131, %v134
    %s136 = sld [smem:[#allocation9 + $0x81]]
    %v137 = vstv %s136
    %v138 = vmul.f32 %v137, %v73
    %v139 = vadd.f32 %v135, %v138
    %s140 = sld [smem:[#allocation9 + $0x82]]
    %v141 = vstv %s140
    %v142 = vmul.f32 %v141, %v74
    %v143 = vadd.f32 %v139, %v142
    %s144 = sld [smem:[#allocation9 + $0x83]]
    %v145 = vstv %s144
    %v146 = vmul.f32 %v145, %v75
    %v147 = vadd.f32 %v143, %v146
    %s148 = sld [smem:[#allocation9 + $0x84]]
    %v149 = vstv %s148
    %v150 = vmul.f32 %v149, %v76
    %v151 = vadd.f32 %v147, %v150
    %s152 = sld [smem:[#allocation9 + $0x85]]
    %v153 = vstv %s152
    %v154 = vmul.f32 %v153, %v77
    %v155 = vadd.f32 %v151, %v154
    %v156 = vmul.f32 %v155, 1.442695
    %v157 = vpow.pop %v156
    %v158 = vadd.f32 %v117, %v157
    %s159 = sld [smem:[#allocation2 + $0x2]]
    %s160 = sld [smem:[#allocation7 + $0x100]]
    %v161 = vstv %s160
    %v162 = vmul.f32 %v161, %v69
    %v163 = vstv %s159
    %v164 = vadd.f32 %v163, %v162
    %s165 = sld [smem:[#allocation7 + $0x101]]
    %v166 = vstv %s165
    %v167 = vmul.f32 %v166, %v70
    %v168 = vadd.f32 %v164, %v167
    %s169 = sld [smem:[#allocation7 + $0x102]]
    %v170 = vstv %s169
    %v171 = vmul.f32 %v170, %v71
    %v172 = vadd.f32 %v168, %v171
    %s173 = sld [smem:[#allocation9 + $0x100]]
    %v174 = vstv %s173
    %v175 = vmul.f32 %v174, %v72
    %v176 = vadd.f32 %v172, %v175
    %s177 = sld [smem:[#allocation9 + $0x101]]
    %v178 = vstv %s177
    %v179 = vmul.f32 %v178, %v73
    %v180 = vadd.f32 %v176, %v179
    %s181 = sld [smem:[#allocation9 + $0x102]]
    %v182 = vstv %s181
    %v183 = vmul.f32 %v182, %v74
    %v184 = vadd.f32 %v180, %v183
    %s185 = sld [smem:[#allocation9 + $0x103]]
    %v186 = vstv %s185
    %v187 = vmul.f32 %v186, %v75
    %v188 = vadd.f32 %v184, %v187
    %s189 = sld [smem:[#allocation9 + $0x104]]
    %v190 = vstv %s189
    %v191 = vmul.f32 %v190, %v76
    %v192 = vadd.f32 %v188, %v191
    %s193 = sld [smem:[#allocation9 + $0x105]]
    %v194 = vstv %s193
    %v195 = vmul.f32 %v194, %v77
    %v196 = vadd.f32 %v192, %v195
    %v197 = vmul.f32 %v196, 1.442695
    %v198 = vpow.pop %v197
    %v199 = vadd.f32 %v158, %v198
    %v200 = vadd.f32 %v199, 0.0
    %v201 = vadd.f32 %v200, 0.0
    %p202 = scmp.eq.s32.totalorder 0, 0
    // Predicated region
    $region34: #{tpu_custom_call.1} parent=1 // pred_check
      %p203 = pneg %p202
    $region35: #{tpu_custom_call.1} parent=1 // pred_check_branch
      %205 = sbr.rel (%p203) target = $region37
    $region36: #{tpu_custom_call.1} parent=1 // pred_region
      %206 = vst [vmem:[#allocation11] sm:$0xff] 0.0
    $region37: #{tpu_custom_call.1} parent=1 // pred_fallthru
      _
    %v207 = vld [vmem:[#allocation11] sm:$0xff]
    %v208 = vadd.f32 %v207, %v201
    %209 = vst [vmem:[#allocation11] sm:$0xff] %v208
    // Predicated region
    $region38: #{tpu_custom_call.1} parent=1 // pred_check
      _
    $region39: #{tpu_custom_call.1} parent=1 // pred_check_branch
      %211 = sbr.rel (0) target = $region41
    $region40: #{tpu_custom_call.1} parent=1 // pred_region
      %s213 = ssub.s32 128, 128
      %214 = vsyncadd [#allocation4], %s213
      %s216 = sshll.u32 [#allocation11], 4
      %s217 = int_to_ptr.vmem [resolvable:$true] %s216
      %219 = dma.vmem_to_hbm [thread:$0]  %s217, 128, %s4, [#allocation4]
    $region41: #{tpu_custom_call.1} parent=1 // pred_fallthru
      _
    // Predicated region
    $region42: #{tpu_custom_call.1} parent=1 // pred_check
      _
    $region43: #{tpu_custom_call.1} parent=1 // pred_check_branch
      %221 = sbr.rel (0) target = $region45
    $region44: #{tpu_custom_call.1} parent=1 // pred_region
      %222 = dma.done [#allocation4], 128
    $region45: #{tpu_custom_call.1} parent=1 // pred_fallthru
      _
    %223 = vsyncpa [#allocation3], 1
    %224 = vsyncpa [#allocation4], 1
    %225 = vsyncpa [#allocation5], 1
    %226 = vsyncpa [#allocation8], 1
    %227 = vsyncpa [#allocation6], 1

</llo_original>
